<compile_context>
chip_gen: v7x
topology: tpu7x:2x2x1
jax: 0.10.0
libtpu: 0.0.40
codegen_flags: <defaults>
</compile_context>

<pallas_src>
import functools

import jax
import jax.numpy as jnp
from jax.experimental import pallas as pl
from jax.experimental.pallas import tpu as pltpu


# ----------------------------- Pallas kernel --------------------------------


def _jac_norm_kernel(jac_ref, jacnorm_ref, norm1_sc, rowsum_sc, *,
                     d_total, t_d, needs_mask):
    """Grid: (batch tiles [parallel], D tiles [reduction, innermost]).

    jac_ref:     (m, b_tile, t_d) Jacobian tile, natural stack layout, native
                 dtype; b_tile is the sublane axis, t_d the lane axis.
    jacnorm_ref: (b_tile, 1) output, written on the last D tile.
    norm1_sc:    (b_tile, 1)    running max over D of per-column sums over m.
    rowsum_sc:   (m, b_tile, 1) running sum over D of |jac| per (m, b) row.
    """
    d = pl.program_id(1)

    @pl.when(d == 0)
    def _():
        # Zero init is safe ONLY because both running stats are over abs-sums
        # (non-negative); likewise the zero-filled masked lanes below.
        norm1_sc[...] = jnp.zeros_like(norm1_sc)
        rowsum_sc[...] = jnp.zeros_like(rowsum_sc)

    aj = jnp.abs(jac_ref[...].astype(jnp.float32))               # (m, bT, tD)
    if needs_mask:
        # Last tile overhangs D: zero the out-of-bounds lanes.  Lane-only iota
        # (1, 1, t_d) broadcast in the compare — no full-tile i32 temporary.
        lane = jax.lax.broadcasted_iota(jnp.int32, (1, 1, t_d), 2)
        aj = jnp.where(d * t_d + lane < d_total, aj, 0.0)

    # sum over m (major axis -> pure VPU adds), then max over lanes (XLU).
    col_sum = aj.sum(axis=0)                                      # (bT, tD)
    norm1_sc[...] = jnp.maximum(norm1_sc[...],
                                col_sum.max(axis=1, keepdims=True))
    # sum over D (lane reduce), accumulated per (m, b) row.
    rowsum_sc[...] = rowsum_sc[...] + aj.sum(axis=2, keepdims=True)

    @pl.when(d == pl.num_programs(1) - 1)
    def _():
        norm_inf = rowsum_sc[...].max(axis=0)                     # (bT, 1)
        jacnorm_ref[...] = jnp.sqrt(norm1_sc[...] * norm_inf)


def _pallas_jac_norm(jac):
    """sqrt(norm_1 * norm_inf) per batch row.

    jac: (m, B, D) in its native dtype and natural jnp.stack layout — no
    wrapper-side transpose / pad / astype copies.
    """
    m, batch, d_total = jac.shape

    itemsize = max(jnp.dtype(jac.dtype).itemsize, 1)
    sub_in = max(8, 32 // itemsize)    # sublane pack of input dtype (f32:8, bf16:16, i8:32)
    sub_f32 = 8

    def _roundup(x, s):
        return -(-x // s) * s

    # ---- Generation-aware VMEM budget ---------------------------------------
    # v5e/v6e: 128 MiB VMEM per core -> big tiles; v7x: 64 MiB -> smaller.
    try:
        vmem_cap = pltpu.get_tpu_info().vmem_capacity_bytes
    except Exception:                       # conservative fallback
        vmem_cap = 64 * 1024 * 1024
    if vmem_cap >= 96 * 1024 * 1024:        # v5e / v6e
        tile_budget = 64 * 1024 * 1024
        vmem_limit = 100 * 1024 * 1024
    else:                                   # v7x
        tile_budget = 24 * 1024 * 1024
        vmem_limit = 48 * 1024 * 1024

    # ---- Batch tiling (parallel grid axis) ----------------------------------
    # Two (or more) aligned batch tiles let both v7x TensorCores stream HBM;
    # harmless (single tile) on v5e/v6e and for small / unaligned batches.
    if batch % (2 * sub_in) == 0:
        b_tile = batch // 2
    else:
        b_tile = batch

    def bytes_per_lane_col(bt):
        # VMEM bytes per 128 lanes of a D tile: double-buffered input (padded
        # to the input dtype's sublane pack) + the f32 |jac| temporary + one
        # f32 col_sum row (8-sublane f32 padding).
        return 128 * (2 * m * _roundup(bt, sub_in) * itemsize
                      + (m + 1) * _roundup(bt, sub_f32) * 4)

    # Shrink the batch tile (keeping alignment & divisibility) instead of
    # silently over-subscribing VMEM for very large batches.
    while bytes_per_lane_col(b_tile) > tile_budget and b_tile % (2 * sub_in) == 0:
        b_tile //= 2
    if bytes_per_lane_col(b_tile) > tile_budget:
        raise ValueError("JacobianReg: batch*(c-1) too large for one 128-lane "
                         "VMEM column; reduce batch or extend batch tiling.")
    num_b = batch // b_tile

    max_td = (tile_budget // bytes_per_lane_col(b_tile)) * 128
    if d_total <= max_td:
        t_d, num_d = d_total, 1          # single tile covers all of D
    else:
        t_d = max_td                     # multiple of 128
        num_d = pl.cdiv(d_total, t_d)
    needs_mask = (num_d * t_d != d_total)

    kern = functools.partial(_jac_norm_kernel, d_total=d_total, t_d=t_d,
                             needs_mask=needs_mask)
    return pl.pallas_call(
        kern,
        out_shape=jax.ShapeDtypeStruct((batch, 1), jnp.float32),
        grid_spec=pltpu.PrefetchScalarGridSpec(
            num_scalar_prefetch=0,
            grid=(num_b, num_d),
            in_specs=[pl.BlockSpec((m, b_tile, t_d), lambda b, d: (0, b, d))],
            out_specs=pl.BlockSpec((b_tile, 1), lambda b, d: (b, 0)),
            scratch_shapes=[pltpu.VMEM((b_tile, 1), jnp.float32),
                            pltpu.VMEM((m, b_tile, 1), jnp.float32)]),
        compiler_params=pltpu.CompilerParams(
            dimension_semantics=("parallel", "arbitrary"),
            vmem_limit_bytes=vmem_limit),
        cost_estimate=pl.CostEstimate(
            flops=3 * jac.size, transcendentals=0,
            bytes_accessed=jac.size * itemsize + batch * 4),
    )(jac)


# ------------------------------- JAX glue ------------------------------------


def _transform_output(logits, num_stab):
    """The differentiable map logits -> new_output used as the autograd target."""
    c = logits.shape[1]
    m = c - 1
    p = jax.nn.softmax(logits, axis=1) * (1.0 - c * num_stab) + num_stab
    s = jnp.sqrt(p)
    return 2.0 * s[:, :m] / (1.0 - s[:, m:m + 1])                # (B, m)


def compute_jacobian(model_fn, data, num_stab):
    """Mirror of the torch.autograd.grad loop (per-column one-hot cotangents).

    Returns jac in the natural (m, B, D) stack layout (no transpose copy); the
    downstream reductions are permuted to match torch's (B, m, D) semantics.
    """
    def f(x):
        return _transform_output(model_fn(x), num_stab)

    new_output, vjp_fn = jax.vjp(f, data)
    batch, m = new_output.shape
    rows = []
    for i in range(m):
        g = jnp.zeros((batch, m), dtype=new_output.dtype).at[:, i].set(1.0)
        rows.append(vjp_fn(g)[0])                                # (B, C, H, W)
    jac = jnp.stack(rows, axis=0)                                # (m, B, C, H, W)
    return jac.reshape(m, batch, -1)                             # (m, B, D)


def jacobian_reg(data, logits, jac, *, epsilon, barrier="relu", num_stab=1e-6):
    """jac: (m, B, D) natural layout."""
    _, _, height, width = data.shape
    n = height * width
    c = logits.shape[1]
    m = c - 1

    # Hot path: streaming reduction over the Jacobian (Pallas kernel).
    jac_norm = _pallas_jac_norm(jac)                             # (B, 1)

    # Tiny per-batch epilogue (softmax / acos / rho) in plain JAX.
    p = jax.nn.softmax(logits.astype(jnp.float32), axis=1)
    p = p * (1.0 - c * num_stab) + num_stab
    delta = 2.0 * jnp.arccos(jnp.sqrt(p / c).sum(axis=1))        # (B,)
    rho = 1.0 - jnp.sqrt(p[:, m])                                # (B,)

    # (B,1) - (B,) -> (B,B), reproducing torch's broadcast; barrier + mean.
    diff = jac_norm - delta / (rho * epsilon)
    if barrier == "relu":
        g = jax.nn.relu(diff)
    elif barrier == "elu":
        g = jax.nn.elu(diff)
    elif barrier == "exp":
        g = jnp.exp(diff)    # can overflow for large diff, same as the reference
    else:
        raise NotImplementedError(barrier)
    return (g / n).mean()


def jacobian_reg_reference(data, logits, jac, *, epsilon, barrier="relu",
                           num_stab=1e-6):
    """Pure-JAX transcription of the torch forward (jac in (m, B, D) layout)."""
    _, _, height, width = data.shape
    n = height * width
    c = logits.shape[1]
    m = c - 1
    p = jax.nn.softmax(logits, axis=1) * (1.0 - c * num_stab) + num_stab
    delta = 2.0 * jnp.arccos(jnp.sqrt(p / c).sum(axis=1))
    rho = 1.0 - jnp.sqrt(p[:, m])
    aj = jnp.abs(jac.astype(jnp.float32))                        # (m, B, D)
    norm_1 = aj.sum(axis=0).max(axis=1)                          # (B,)
    norm_inf = aj.sum(axis=2).max(axis=0)                        # (B,)
    jac_norm = jnp.sqrt(norm_1 * norm_inf)[:, None]              # (B, 1)
    diff = jac_norm - delta / (rho * epsilon)                    # (B,1)-(B,) -> (B,B)
    if barrier == "relu":
        g = jax.nn.relu(diff)
    elif barrier == "elu":
        g = jax.nn.elu(diff)
    elif barrier == "exp":
        g = jnp.exp(diff)
    else:
        raise NotImplementedError(barrier)
    return (g / n).mean()


# --------------------------------- main --------------------------------------


if __name__ == "__main__":
    B, C, H, W = 2, 4, 16, 16
    NUM_CLASSES = 5                      # c=5 -> m=4
    EPSILON = 0.25
    NUM_STAB = 1e-6
    BARRIER = "relu"

    key = jax.random.PRNGKey(0)
    k_data, k_w, k_b = jax.random.split(key, 3)
    data = jax.random.normal(k_data, (B, C, H, W), dtype=jnp.float32)

    # Deterministic synthetic "model" producing the logits (flatten -> linear).
    Wmat = 0.05 * jax.random.normal(k_w, (C * H * W, NUM_CLASSES), dtype=jnp.float32)
    bvec = 0.1 * jax.random.normal(k_b, (NUM_CLASSES,), dtype=jnp.float32)

    def model_fn(x):
        return x.reshape(x.shape[0], -1) @ Wmat + bvec           # (B, c) logits

    logits = model_fn(data)
    jac = compute_jacobian(model_fn, data, NUM_STAB)             # (m, B, C*H*W)

    reg = jacobian_reg(data, logits, jac, epsilon=EPSILON,
                       barrier=BARRIER, num_stab=NUM_STAB)
    reg = jax.block_until_ready(reg)

    ref = jacobian_reg_reference(data, logits, jac, epsilon=EPSILON,
                                 barrier=BARRIER, num_stab=NUM_STAB)
    ref = jax.block_until_ready(ref)

    if not bool(jnp.allclose(reg, ref, rtol=1e-5, atol=1e-6)):
        raise AssertionError(f"mismatch: pallas={reg} ref={ref}")

    print("KERNEL_OK")
</pallas_src>

<mosaic_0001>
module attributes {stable_mosaic.version = 11 : i64} {
  func.func @_jac_norm_kernel(%arg0: i32, %arg1: i32, %arg2: memref<4x2x1024xf32, #tpu.memory_space<vmem>>, %arg3: memref<2x1xf32, #tpu.memory_space<vmem>>, %arg4: memref<2x1xf32, #tpu.memory_space<vmem>>, %arg5: memref<4x2x1xf32, #tpu.memory_space<vmem>>) attributes {dimension_semantics = [#tpu.dimension_semantics<parallel>, #tpu.dimension_semantics<arbitrary>], iteration_bounds = array<i64: 1, 1>, scalar_prefetch = 0 : i64, scratch_operands = 2 : i64, tpu.core_type = #tpu.core_type<tc>, window_params = [{transform_indices = @transform_0, window_bounds = array<i64: 4, 2, 1024>}, {transform_indices = @transform_1, window_bounds = array<i64: 2, 1>}]} {
    %c0_i32 = arith.constant 0 : i32
    %0 = arith.cmpi eq, %arg1, %c0_i32 : i32
    %1 = arith.extui %0 : i1 to i32
    %c0_i32_0 = arith.constant 0 : i32
    %2 = arith.cmpi ne, %1, %c0_i32_0 : i32
    scf.if %2 {
      %cst_17 = arith.constant 0.000000e+00 : f32
      %19 = vector.broadcast %cst_17 : f32 to vector<2x1xf32>
      %c0_18 = arith.constant 0 : index
      %c0_19 = arith.constant 0 : index
      %20 = vector.load %arg4[%c0_18, %c0_19] : memref<2x1xf32, #tpu.memory_space<vmem>>, vector<2x1xf32>
      tpu.vector_store %arg4[%c0_18, %c0_19], %19 {strides = array<i32>} : memref<2x1xf32, #tpu.memory_space<vmem>>, vector<2x1xf32>,
      %cst_20 = arith.constant 0.000000e+00 : f32
      %21 = vector.broadcast %cst_20 : f32 to vector<4x2x1xf32>
      %c0_21 = arith.constant 0 : index
      %c0_22 = arith.constant 0 : index
      %c0_23 = arith.constant 0 : index
      %22 = vector.load %arg5[%c0_21, %c0_22, %c0_23] : memref<4x2x1xf32, #tpu.memory_space<vmem>>, vector<4x2x1xf32>
      tpu.vector_store %arg5[%c0_21, %c0_22, %c0_23], %21 {strides = array<i32>} : memref<4x2x1xf32, #tpu.memory_space<vmem>>, vector<4x2x1xf32>,
    } else {
    }
    %c0 = arith.constant 0 : index
    %c0_1 = arith.constant 0 : index
    %c0_2 = arith.constant 0 : index
    %3 = vector.load %arg2[%c0, %c0_1, %c0_2] : memref<4x2x1024xf32, #tpu.memory_space<vmem>>, vector<4x2x1024xf32>
    %4 = math.absf %3 : vector<4x2x1024xf32>
    %cst = arith.constant dense<0.000000e+00> : vector<2x1024xf32>
    %5 = vector.multi_reduction <add>, %4, %cst [0] : vector<4x2x1024xf32> to vector<2x1024xf32>
    %c0_3 = arith.constant 0 : index
    %c0_4 = arith.constant 0 : index
    %6 = vector.load %arg4[%c0_3, %c0_4] : memref<2x1xf32, #tpu.memory_space<vmem>>, vector<2x1xf32>
    %cst_5 = arith.constant dense<0xFF800000> : vector<2xf32>
    %7 = vector.multi_reduction <maximumf>, %5, %cst_5 [1] : vector<2x1024xf32> to vector<2xf32>
    %8 = vector.shape_cast %7 : vector<2xf32> to vector<2x1xf32>
    %9 = arith.maximumf %6, %8 : vector<2x1xf32>
    %c0_6 = arith.constant 0 : index
    %c0_7 = arith.constant 0 : index
    %10 = vector.load %arg4[%c0_6, %c0_7] : memref<2x1xf32, #tpu.memory_space<vmem>>, vector<2x1xf32>
    tpu.vector_store %arg4[%c0_6, %c0_7], %9 {strides = array<i32>} : memref<2x1xf32, #tpu.memory_space<vmem>>, vector<2x1xf32>,
    %c0_8 = arith.constant 0 : index
    %c0_9 = arith.constant 0 : index
    %c0_10 = arith.constant 0 : index
    %11 = vector.load %arg5[%c0_8, %c0_9, %c0_10] : memref<4x2x1xf32, #tpu.memory_space<vmem>>, vector<4x2x1xf32>
    %cst_11 = arith.constant dense<0.000000e+00> : vector<4x2xf32>
    %12 = vector.multi_reduction <add>, %4, %cst_11 [2] : vector<4x2x1024xf32> to vector<4x2xf32>
    %13 = vector.shape_cast %12 : vector<4x2xf32> to vector<4x2x1xf32>
    %14 = arith.addf %11, %13 : vector<4x2x1xf32>
    %c0_12 = arith.constant 0 : index
    %c0_13 = arith.constant 0 : index
    %c0_14 = arith.constant 0 : index
    %15 = vector.load %arg5[%c0_12, %c0_13, %c0_14] : memref<4x2x1xf32, #tpu.memory_space<vmem>>, vector<4x2x1xf32>
    tpu.vector_store %arg5[%c0_12, %c0_13, %c0_14], %14 {strides = array<i32>} : memref<4x2x1xf32, #tpu.memory_space<vmem>>, vector<4x2x1xf32>,
    %c0_i32_15 = arith.constant 0 : i32
    %16 = arith.cmpi eq, %arg1, %c0_i32_15 : i32
    %17 = arith.extui %16 : i1 to i32
    %c0_i32_16 = arith.constant 0 : i32
    %18 = arith.cmpi ne, %17, %c0_i32_16 : i32
    scf.if %18 {
      %c0_17 = arith.constant 0 : index
      %c0_18 = arith.constant 0 : index
      %c0_19 = arith.constant 0 : index
      %19 = vector.load %arg5[%c0_17, %c0_18, %c0_19] : memref<4x2x1xf32, #tpu.memory_space<vmem>>, vector<4x2x1xf32>
      %cst_20 = arith.constant dense<0xFF800000> : vector<2x1xf32>
      %20 = vector.multi_reduction <maximumf>, %19, %cst_20 [0] : vector<4x2x1xf32> to vector<2x1xf32>
      %c0_21 = arith.constant 0 : index
      %c0_22 = arith.constant 0 : index
      %21 = vector.load %arg4[%c0_21, %c0_22] : memref<2x1xf32, #tpu.memory_space<vmem>>, vector<2x1xf32>
      %22 = arith.mulf %21, %20 : vector<2x1xf32>
      %23 = math.sqrt %22 : vector<2x1xf32>
      %c0_23 = arith.constant 0 : index
      %c0_24 = arith.constant 0 : index
      %24 = vector.load %arg3[%c0_23, %c0_24] : memref<2x1xf32, #tpu.memory_space<vmem>>, vector<2x1xf32>
      tpu.vector_store %arg3[%c0_23, %c0_24], %23 {strides = array<i32>} : memref<2x1xf32, #tpu.memory_space<vmem>>, vector<2x1xf32>,
    } else {
    }
    return
  }
  func.func @transform_0(%arg0: i32, %arg1: i32) -> (i32, i32, i32) {
    %c0_i32 = arith.constant 0 : i32
    %c0_i32_0 = arith.constant 0 : i32
    return %c0_i32, %arg0, %arg1 : i32, i32, i32
  }
  func.func @transform_1(%arg0: i32, %arg1: i32) -> (i32, i32) {
    %c0_i32 = arith.constant 0 : i32
    %c0_i32_0 = arith.constant 0 : i32
    return %arg0, %c0_i32 : i32, i32
  }
}

</mosaic_0001>

<llo_original>
// kernel: tpu_custom_call.1
$region0: #{tpu_custom_call.1}
  #allocation0 [shape = 'u32[]', space=smem, size = 0x4, offset = 0x4, fixed_abs, tag = 'smem constant byte address 0x4 - core index']
  #allocation1 [shape = 'u32[144,128]{1,0:T(1,128)}', space=vmem, size = 0x12000, scoped, tag = 'internal scratch']
  #allocation2 [shape = 'f32[2,1]{1,0:T(2,128)}', space=vmem, size = 0x400, scoped, tag = 'scratch operand']
  #allocation3 [shape = 'f32[4,2,1]{2,1,0:T(2,128)}', space=vmem, size = 0x1000, scoped, tag = 'scratch operand']
  %s0 = inlined_call_operand.hbm [shape: f32[4,2,1024], index: 0, kind: input, shape index: {}]
  %s1 = inlined_call_operand.vmem [shape: f32[2,1], index: 1, kind: output, shape index: {}]
  %s2 = sld [smem:[#allocation0]]
  $region26: #{tpu_custom_call.1} parent=0
    _
  %s4 = ssub.s32 1, %s2
  %s5 = scalar_select 0, %s4, %s2
  $region1: #{tpu_custom_call.1} parent=0
    #allocation4 [shape = 'u8[32768]{0}', space=vmem, size = 0x8000, scoped, tag = 'input window, operand 0, single buffered']
    #allocation5 [shape = 's32[1]{0}', space=sflag, size = 0x4, scoped, tag = 'scoped memory for tpu_custom_call.1']
    %6 = vsyncpa [#allocation5], 0
    // Predicated region
    $region2: #{tpu_custom_call.1} parent=1 // pred_check
      _
    $region3: #{tpu_custom_call.1} parent=1 // pred_check_branch
      %8 = sbr.rel (0) target = $region5
    $region4: #{tpu_custom_call.1} parent=1 // pred_region
      %s10 = ssub.s32 1024, 1024
      %11 = vsyncadd [#allocation5], %s10
      %s12 = sshll.u32 [#allocation4], 4
      %s13 = int_to_ptr.vmem [resolvable:$true] %s12
      %18 = dma.hbm_to_vmem [thread:$0]  %s0, 1024, %s13, [#allocation5], 256, 256, 16
    $region5: #{tpu_custom_call.1} parent=1 // pred_fallthru
      _
    // Predicated region
    $region6: #{tpu_custom_call.1} parent=1 // pred_check
      _
    $region7: #{tpu_custom_call.1} parent=1 // pred_check_branch
      %20 = sbr.rel (0) target = $region9
    $region8: #{tpu_custom_call.1} parent=1 // pred_region
      %21 = dma.done [#allocation5], 1024
    $region9: #{tpu_custom_call.1} parent=1 // pred_fallthru
      _
    %p22 = scmp.eq.s32.totalorder 0, 0
    // Predicated region
    $region10: #{tpu_custom_call.1} parent=1 // pred_check
      %p23 = pneg %p22
    $region11: #{tpu_custom_call.1} parent=1 // pred_check_branch
      %25 = sbr.rel (%p23) target = $region13
    $region12: #{tpu_custom_call.1} parent=1 // pred_region
      %vm26 = vcmask 1024
      %27 = vst.msk [vmem:[#allocation2] sm:$0x3] %vm26, 0.0
      %28 = vst.msk [vmem:[#allocation3] sm:$0x3] %vm26, 0.0
      %29 = vst.msk [vmem:[#allocation3 + $0x2] sm:$0x3] %vm26, 0.0
      %30 = vst.msk [vmem:[#allocation3 + $0x4] sm:$0x3] %vm26, 0.0
      %31 = vst.msk [vmem:[#allocation3 + $0x6] sm:$0x3] %vm26, 0.0
    $region13: #{tpu_custom_call.1} parent=1 // pred_fallthru
      _
    %v32 = vld [vmem:[#allocation4] sm:$0xff]
    %v33 = vld [vmem:[#allocation4 + $0x8] sm:$0xff]
    %v34 = vld [vmem:[#allocation4 + $0x10] sm:$0xff]
    %v35 = vld [vmem:[#allocation4 + $0x18] sm:$0xff]
    %v36 = vld [vmem:[#allocation4 + $0x20] sm:$0xff]
    %v37 = vld [vmem:[#allocation4 + $0x28] sm:$0xff]
    %v38 = vld [vmem:[#allocation4 + $0x30] sm:$0xff]
    %v39 = vld [vmem:[#allocation4 + $0x38] sm:$0xff]
    %v40 = vand.u32 2147483647, %v32
    %v41 = vand.u32 2147483647, %v33
    %v42 = vand.u32 2147483647, %v34
    %v43 = vand.u32 2147483647, %v35
    %v44 = vand.u32 2147483647, %v36
    %v45 = vand.u32 2147483647, %v37
    %v46 = vand.u32 2147483647, %v38
    %v47 = vand.u32 2147483647, %v39
    %v56 = vcombine.high %v40, %v40
    %v58 = vunpack.c.l.s4 1983009808
    %v59 = vunpack.c.0.s8 %v58
    %v60 = vlaneseq
    %v61 = vshrl.u32 %v60, 7
    %v62 = vsub.s32 %v59, %v61
    %v63 = vrot.slane %v40, %v62
    %v65 = vunpack.c.l.s4 1983009808
    %v66 = vunpack.c.0.s8 %v65
    %v67 = vlaneseq
    %v68 = vshrl.u32 %v67, 7
    %v69 = vsub.s32 %v66, %v68
    %v70 = vrot.slane %v56, %v69
    %v71 = vcombine.high %v63, %v63
    %v72 = vcombine.high %v70, %v70
    %v73 = vcombine.high %v41, %v41
    %v75 = vunpack.c.l.s4 1983009808
    %v76 = vunpack.c.0.s8 %v75
    %v77 = vlaneseq
    %v78 = vshrl.u32 %v77, 7
    %v79 = vsub.s32 %v76, %v78
    %v80 = vrot.slane %v41, %v79
    %v82 = vunpack.c.l.s4 1983009808
    %v83 = vunpack.c.0.s8 %v82
    %v84 = vlaneseq
    %v85 = vshrl.u32 %v84, 7
    %v86 = vsub.s32 %v83, %v85
    %v87 = vrot.slane %v73, %v86
    %v88 = vcombine.high %v80, %v80
    %v89 = vcombine.high %v87, %v87
    %v90 = vcombine.high %v42, %v42
    %v92 = vunpack.c.l.s4 1983009808
    %v93 = vunpack.c.0.s8 %v92
    %v94 = vlaneseq
    %v95 = vshrl.u32 %v94, 7
    %v96 = vsub.s32 %v93, %v95
    %v97 = vrot.slane %v42, %v96
    %v99 = vunpack.c.l.s4 1983009808
    %v100 = vunpack.c.0.s8 %v99
    %v101 = vlaneseq
    %v102 = vshrl.u32 %v101, 7
    %v103 = vsub.s32 %v100, %v102
    %v104 = vrot.slane %v90, %v103
    %v105 = vcombine.high %v97, %v97
    %v106 = vcombine.high %v104, %v104
    %v107 = vcombine.high %v43, %v43
    %v109 = vunpack.c.l.s4 1983009808
    %v110 = vunpack.c.0.s8 %v109
    %v111 = vlaneseq
    %v112 = vshrl.u32 %v111, 7
    %v113 = vsub.s32 %v110, %v112
    %v114 = vrot.slane %v43, %v113
    %v116 = vunpack.c.l.s4 1983009808
    %v117 = vunpack.c.0.s8 %v116
    %v118 = vlaneseq
    %v119 = vshrl.u32 %v118, 7
    %v120 = vsub.s32 %v117, %v119
    %v121 = vrot.slane %v107, %v120
    %v122 = vcombine.high %v114, %v114
    %v123 = vcombine.high %v121, %v121
    %v124 = vcombine.high %v44, %v44
    %v126 = vunpack.c.l.s4 1983009808
    %v127 = vunpack.c.0.s8 %v126
    %v128 = vlaneseq
    %v129 = vshrl.u32 %v128, 7
    %v130 = vsub.s32 %v127, %v129
    %v131 = vrot.slane %v44, %v130
    %v133 = vunpack.c.l.s4 1983009808
    %v134 = vunpack.c.0.s8 %v133
    %v135 = vlaneseq
    %v136 = vshrl.u32 %v135, 7
    %v137 = vsub.s32 %v134, %v136
    %v138 = vrot.slane %v124, %v137
    %v139 = vcombine.high %v131, %v131
    %v140 = vcombine.high %v138, %v138
    %v141 = vcombine.high %v45, %v45
    %v143 = vunpack.c.l.s4 1983009808
    %v144 = vunpack.c.0.s8 %v143
    %v145 = vlaneseq
    %v146 = vshrl.u32 %v145, 7
    %v147 = vsub.s32 %v144, %v146
    %v148 = vrot.slane %v45, %v147
    %v150 = vunpack.c.l.s4 1983009808
    %v151 = vunpack.c.0.s8 %v150
    %v152 = vlaneseq
    %v153 = vshrl.u32 %v152, 7
    %v154 = vsub.s32 %v151, %v153
    %v155 = vrot.slane %v141, %v154
    %v156 = vcombine.high %v148, %v148
    %v157 = vcombine.high %v155, %v155
    %v158 = vcombine.high %v46, %v46
    %v160 = vunpack.c.l.s4 1983009808
    %v161 = vunpack.c.0.s8 %v160
    %v162 = vlaneseq
    %v163 = vshrl.u32 %v162, 7
    %v164 = vsub.s32 %v161, %v163
    %v165 = vrot.slane %v46, %v164
    %v167 = vunpack.c.l.s4 1983009808
    %v168 = vunpack.c.0.s8 %v167
    %v169 = vlaneseq
    %v170 = vshrl.u32 %v169, 7
    %v171 = vsub.s32 %v168, %v170
    %v172 = vrot.slane %v158, %v171
    %v173 = vcombine.high %v165, %v165
    %v174 = vcombine.high %v172, %v172
    %v175 = vcombine.high %v47, %v47
    %v177 = vunpack.c.l.s4 1983009808
    %v178 = vunpack.c.0.s8 %v177
    %v179 = vlaneseq
    %v180 = vshrl.u32 %v179, 7
    %v181 = vsub.s32 %v178, %v180
    %v182 = vrot.slane %v47, %v181
    %v184 = vunpack.c.l.s4 1983009808
    %v185 = vunpack.c.0.s8 %v184
    %v186 = vlaneseq
    %v187 = vshrl.u32 %v186, 7
    %v188 = vsub.s32 %v185, %v187
    %v189 = vrot.slane %v175, %v188
    %v190 = vcombine.high %v182, %v182
    %v191 = vcombine.high %v189, %v189
    %vm224 = vcmask 1041408
    %v225 = vsel %vm224, %v63, 0.0
    %v226 = vsel %vm224, %v97, 0.0
    %v227 = vadd.f32 %v225, %v226
    %v228 = vsel %vm224, %v131, 0.0
    %v229 = vadd.f32 %v227, %v228
    %v230 = vsel %vm224, %v165, 0.0
    %v231 = vadd.f32 %v229, %v230
    %v232 = vsel %vm224, %v71, 0.0
    %v233 = vsel %vm224, %v105, 0.0
    %v234 = vadd.f32 %v232, %v233
    %v235 = vsel %vm224, %v139, 0.0
    %v236 = vadd.f32 %v234, %v235
    %v237 = vsel %vm224, %v173, 0.0
    %v238 = vadd.f32 %v236, %v237
    %v239 = vsel %vm224, %v70, 0.0
    %v240 = vsel %vm224, %v104, 0.0
    %v241 = vadd.f32 %v239, %v240
    %v242 = vsel %vm224, %v138, 0.0
    %v243 = vadd.f32 %v241, %v242
    %v244 = vsel %vm224, %v172, 0.0
    %v245 = vadd.f32 %v243, %v244
    %v246 = vsel %vm224, %v72, 0.0
    %v247 = vsel %vm224, %v106, 0.0
    %v248 = vadd.f32 %v246, %v247
    %v249 = vsel %vm224, %v140, 0.0
    %v250 = vadd.f32 %v248, %v249
    %v251 = vsel %vm224, %v174, 0.0
    %v252 = vadd.f32 %v250, %v251
    %v253 = vsel %vm224, %v80, 0.0
    %v254 = vsel %vm224, %v114, 0.0
    %v255 = vadd.f32 %v253, %v254
    %v256 = vsel %vm224, %v148, 0.0
    %v257 = vadd.f32 %v255, %v256
    %v258 = vsel %vm224, %v182, 0.0
    %v259 = vadd.f32 %v257, %v258
    %v260 = vsel %vm224, %v88, 0.0
    %v261 = vsel %vm224, %v122, 0.0
    %v262 = vadd.f32 %v260, %v261
    %v263 = vsel %vm224, %v156, 0.0
    %v264 = vadd.f32 %v262, %v263
    %v265 = vsel %vm224, %v190, 0.0
    %v266 = vadd.f32 %v264, %v265
    %v267 = vsel %vm224, %v87, 0.0
    %v268 = vsel %vm224, %v121, 0.0
    %v269 = vadd.f32 %v267, %v268
    %v270 = vsel %vm224, %v155, 0.0
    %v271 = vadd.f32 %v269, %v270
    %v272 = vsel %vm224, %v189, 0.0
    %v273 = vadd.f32 %v271, %v272
    %v274 = vsel %vm224, %v89, 0.0
    %v275 = vsel %vm224, %v123, 0.0
    %v276 = vadd.f32 %v274, %v275
    %v277 = vsel %vm224, %v157, 0.0
    %v278 = vadd.f32 %v276, %v277
    %v279 = vsel %vm224, %v191, 0.0
    %v280 = vadd.f32 %v278, %v279
    %v281 = vld [vmem:[#allocation2] sm:$0x3]
    %v282 = vsel %vm224, %v231, -inf
    %v283 = vsel %vm224, %v238, -inf
    %v284 = vsel %vm224, %v245, -inf
    %v285 = vsel %vm224, %v252, -inf
    %v286 = vsel %vm224, %v259, -inf
    %v287 = vmax.f32 %v282, %v286
    %v288 = vsel %vm224, %v266, -inf
    %v289 = vmax.f32 %v283, %v288
    %v290 = vsel %vm224, %v273, -inf
    %v291 = vmax.f32 %v284, %v290
    %v292 = vsel %vm224, %v280, -inf
    %v293 = vmax.f32 %v285, %v292
    %v294 = vmax.f32 %v287, %v289
    %v295 = vmax.f32 %v291, %v293
    %v296 = vmax.f32 %v294, %v295
    %297 = vmax.xlane.f32.xlu0 %v296
    %v298 = vpop.xlane.xlu0 %297
    %v299 = vmax.f32 %v281, %v298
    %vm300 = vcmask 1024
    %301 = vst.msk [vmem:[#allocation2] sm:$0x3] %vm300, %v299
    %v302 = vld [vmem:[#allocation3] sm:$0x3]
    %v303 = vld [vmem:[#allocation3 + $0x2] sm:$0x3]
    %v304 = vld [vmem:[#allocation3 + $0x4] sm:$0x3]
    %v305 = vld [vmem:[#allocation3 + $0x6] sm:$0x3]
    %v306 = vadd.f32 %v225, %v232
    %v307 = vadd.f32 %v306, %v239
    %v308 = vadd.f32 %v307, %v246
    %v309 = vadd.f32 %v308, %v253
    %v310 = vadd.f32 %v309, %v260
    %v311 = vadd.f32 %v310, %v267
    %v312 = vadd.f32 %v311, %v274
    %313 = vadd.xlane.f32.xlu0 %v312
    %v314 = vpop.xlane.xlu0 %313
    %v315 = vadd.f32 %v226, %v233
    %v316 = vadd.f32 %v315, %v240
    %v317 = vadd.f32 %v316, %v247
    %v318 = vadd.f32 %v317, %v254
    %v319 = vadd.f32 %v318, %v261
    %v320 = vadd.f32 %v319, %v268
    %v321 = vadd.f32 %v320, %v275
    %322 = vadd.xlane.f32.xlu0 %v321
    %v323 = vpop.xlane.xlu0 %322
    %v324 = vadd.f32 %v228, %v235
    %v325 = vadd.f32 %v324, %v242
    %v326 = vadd.f32 %v325, %v249
    %v327 = vadd.f32 %v326, %v256
    %v328 = vadd.f32 %v327, %v263
    %v329 = vadd.f32 %v328, %v270
    %v330 = vadd.f32 %v329, %v277
    %331 = vadd.xlane.f32.xlu0 %v330
    %v332 = vpop.xlane.xlu0 %331
    %v333 = vadd.f32 %v230, %v237
    %v334 = vadd.f32 %v333, %v244
    %v335 = vadd.f32 %v334, %v251
    %v336 = vadd.f32 %v335, %v258
    %v337 = vadd.f32 %v336, %v265
    %v338 = vadd.f32 %v337, %v272
    %v339 = vadd.f32 %v338, %v279
    %340 = vadd.xlane.f32.xlu0 %v339
    %v341 = vpop.xlane.xlu0 %340
    %v342 = vadd.f32 %v302, %v314
    %v343 = vadd.f32 %v303, %v323
    %v344 = vadd.f32 %v304, %v332
    %v345 = vadd.f32 %v305, %v341
    %346 = vst.msk [vmem:[#allocation3] sm:$0x3] %vm300, %v342
    %347 = vst.msk [vmem:[#allocation3 + $0x2] sm:$0x3] %vm300, %v343
    %348 = vst.msk [vmem:[#allocation3 + $0x4] sm:$0x3] %vm300, %v344
    %349 = vst.msk [vmem:[#allocation3 + $0x6] sm:$0x3] %vm300, %v345
    // Predicated region
    $region14: #{tpu_custom_call.1} parent=1 // pred_check
      %p350 = pneg %p22
    $region15: #{tpu_custom_call.1} parent=1 // pred_check_branch
      %352 = sbr.rel (%p350) target = $region17
    $region16: #{tpu_custom_call.1} parent=1 // pred_region
      %v353 = vld [vmem:[#allocation3] sm:$0x3]
      %v354 = vld [vmem:[#allocation3 + $0x2] sm:$0x3]
      %v355 = vld [vmem:[#allocation3 + $0x4] sm:$0x3]
      %v356 = vld [vmem:[#allocation3 + $0x6] sm:$0x3]
      %v357 = vsel %vm300, %v353, -inf
      %v358 = vsel %vm300, %v354, -inf
      %v359 = vsel %vm300, %v355, -inf
      %v360 = vsel %vm300, %v356, -inf
      %v361 = vmax.f32 %v357, %v358
      %v362 = vmax.f32 %v359, %v360
      %v363 = vmax.f32 %v361, %v362
      %v364 = vld [vmem:[#allocation2] sm:$0x3]
      %v365 = vmul.f32 %v364, %v363
      %v366 = vrsqrt.pop %v365
      %v367 = vmul.f32 %v365, %v366
      %vm368 = vcmp.eq.f32.partialorder %v365, inf
      %v369 = vsel %vm368, %v365, %v367
      %vm370 = vcmp.eq.f32.partialorder %v365, 0.0
      %v371 = vand.u32 %v365, 2147483648
      %v372 = vsel %vm370, %v371, %v369
      %373 = vst.msk [vmem:[%s1] sm:$0x3] %vm300, %v372
    $region17: #{tpu_custom_call.1} parent=1 // pred_fallthru
      _
    // Predicated region
    $region18: #{tpu_custom_call.1} parent=1 // pred_check
      _
    $region19: #{tpu_custom_call.1} parent=1 // pred_check_branch
      %375 = sbr.rel (0) target = $region21
    $region20: #{tpu_custom_call.1} parent=1 // pred_region
      _
    $region21: #{tpu_custom_call.1} parent=1 // pred_fallthru
      _
    // Predicated region
    $region22: #{tpu_custom_call.1} parent=1 // pred_check
      _
    $region23: #{tpu_custom_call.1} parent=1 // pred_check_branch
      %377 = sbr.rel (0) target = $region25
    $region24: #{tpu_custom_call.1} parent=1 // pred_region
      _
    $region25: #{tpu_custom_call.1} parent=1 // pred_fallthru
      _
    %378 = vsyncpa [#allocation5], 1

</llo_original>
